<compile_context>
chip_gen: v7x
topology: tpu7x:2x2x1
jax: 0.10.0
libtpu: 0.0.40
codegen_flags: <defaults>
</compile_context>

<pallas_src>
import functools

import jax
import jax.numpy as jnp
from jax import lax
from jax.experimental import pallas as pl
from jax.experimental.pallas import tpu as pltpu


def _round_up(x, m):
    return ((x + m - 1) // m) * m


def _contrastive_loss_kernel(x0_ref, x1_ref, y_ref, out_ref, *,
                             margin, tb, rem, last_block, cast_early):
    """One (TB, D) batch tile -> one (8, 128) lane-dense partial-sum block."""
    if cast_early:
        # f32 / integer inputs: upcast before subtract (v5e has no bf16 VPU).
        diff = x0_ref[...].astype(jnp.float32) - x1_ref[...].astype(jnp.float32)
    else:
        # bf16/fp8 inputs: subtract in native dtype (native VPU op on
        # v6e/v7x), upcast only for square/accumulate.
        diff = (x0_ref[...] - x1_ref[...]).astype(jnp.float32)

    y = y_ref[...]                                           # (TB, 1) f32
    # TODO(synk): if a v7x bf16 profile shows VALU binding, offload this
    # D-axis reduce to the MXU via jnp.dot(diff*diff, ones((D, 1), f32)).
    dist_sq = jnp.sum(diff * diff, axis=1, keepdims=True)    # (TB, 1)
    dist = jnp.sqrt(dist_sq)
    clamped = jnp.maximum(margin - dist, 0.0)                # clamp(min=0)
    loss = y * dist_sq + (1.0 - y) * (clamped * clamped)     # (TB, 1)

    def _write(val):
        # Lane-dense, sublane-full (8, 128) block: unmasked stores, fully
        # conforming to the (8, 128) tiling constraint on every generation.
        out_ref[...] = jnp.full((8, 128), val, dtype=jnp.float32)

    if rem == 0:
        _write(jnp.sum(loss))
    else:
        i = pl.program_id(0)

        @pl.when(i != last_block)
        def _():
            _write(jnp.sum(loss))

        @pl.when(i == last_block)
        def _():
            # Tail tile: drop padded rows via a select (NOT multiplicative
            # masking -- padded rows may hold NaN/Inf garbage).
            row = lax.broadcasted_iota(jnp.int32, (tb, 1), 0)
            _write(jnp.sum(jnp.where(row < rem, loss, 0.0)))


def _tile_config():
    """Per-generation (per-input tile byte budget, scoped-VMEM limit)."""
    try:
        cap = int(pltpu.get_tpu_info().vmem_capacity_bytes)
    except Exception:
        cap = None
    if cap is not None and cap >= 96 * 1024 * 1024:
        # v5e / v6e: 128 MiB VMEM -> big tiles + raised scoped-VMEM limit.
        return 6 * 1024 * 1024, 96 * 1024 * 1024
    # v7x (64 MiB per TensorCore) or unknown chip: stay conservative.
    return 3 * 1024 * 1024, 48 * 1024 * 1024


def contrastive_loss(x0, x1, y, margin: float = 1.0):
    """Pallas ContrastiveLoss forward. x0, x1: (B, D); y: (B,) labels."""
    assert x0.shape == x1.shape and x0.ndim == 2
    B, D = x0.shape
    y2 = y.reshape(B, 1).astype(jnp.float32)   # tiny; cheap wrapper-side cast

    dtype = jnp.dtype(x0.dtype)
    itemsize = dtype.itemsize
    # Sublane packing: 8 rows for 4-byte, 16 for 2-byte, 32 for 1-byte dtypes.
    pack = max(8, 32 // max(1, itemsize))
    cast_early = not (jnp.issubdtype(dtype, jnp.floating) and itemsize < 4)

    tile_budget, vmem_limit = _tile_config()
    row_bytes = max(1, D * itemsize)
    tb = tile_budget // row_bytes                 # byte budget, not row count
    tb = max(pack, min(tb, 2048))                 # bound lane-sparse (TB,1) temps
    tb = (tb // pack) * pack
    tb = min(tb, _round_up(B, pack))
    grid = pl.cdiv(B, tb)
    rem = B % tb

    kernel = functools.partial(
        _contrastive_loss_kernel,
        margin=float(margin), tb=tb, rem=rem, last_block=grid - 1,
        cast_early=cast_early)

    cost = pl.CostEstimate(
        flops=3 * B * D + 8 * B,
        transcendentals=B,
        bytes_accessed=2 * B * D * itemsize + B * 4 + grid * 8 * 128 * 4,
    )

    partials = pl.pallas_call(
        kernel,
        out_shape=jax.ShapeDtypeStruct((grid * 8, 128), jnp.float32),
        grid_spec=pltpu.PrefetchScalarGridSpec(
            num_scalar_prefetch=0,
            grid=(grid,),
            in_specs=[
                pl.BlockSpec((tb, D), lambda i: (i, 0)),
                pl.BlockSpec((tb, D), lambda i: (i, 0)),
                pl.BlockSpec((tb, 1), lambda i: (i, 0)),
            ],
            out_specs=pl.BlockSpec((8, 128), lambda i: (i, 0)),
        ),
        compiler_params=pltpu.CompilerParams(
            dimension_semantics=("parallel",),
            vmem_limit_bytes=vmem_limit,
        ),
        cost_estimate=cost,
    )(x0, x1, y2)

    # One representative element per block; tiny final reduction in plain JAX.
    return jnp.sum(partials[0::8, 0]) / 2.0 / B


def _reference(x0, x1, y, margin=1.0):
    diff = x0.astype(jnp.float32) - x1.astype(jnp.float32)
    dist_sq = jnp.sum(diff ** 2, axis=1)
    dist = jnp.sqrt(dist_sq)
    mdist = margin - dist
    dist_c = jnp.maximum(mdist, 0.0)
    loss = y * dist_sq + (1.0 - y) * dist_c ** 2
    return jnp.sum(loss) / 2.0 / x0.shape[0]


if __name__ == "__main__":
    key = jax.random.PRNGKey(0)
    k0, k1, ky = jax.random.split(key, 3)

    B, D = 8, 32  # small shapes: batch of 8 embedding pairs, hidden dim 32
    x0 = jax.random.normal(k0, (B, D), dtype=jnp.float32)
    x1 = jax.random.normal(k1, (B, D), dtype=jnp.float32)
    y = jax.random.bernoulli(ky, 0.5, (B,)).astype(jnp.float32)

    loss = contrastive_loss(x0, x1, y, margin=1.0)
    jax.block_until_ready(loss)

    ref = _reference(x0, x1, y, margin=1.0)
    assert jnp.allclose(loss, ref, rtol=1e-5, atol=1e-5), (loss, ref)

    print("KERNEL_OK")
</pallas_src>

<mosaic_0001>
module attributes {stable_mosaic.version = 11 : i64} {
  func.func @_contrastive_loss_kernel(%arg0: i32, %arg1: memref<8x32xf32, #tpu.memory_space<vmem>>, %arg2: memref<8x32xf32, #tpu.memory_space<vmem>>, %arg3: memref<8x1xf32, #tpu.memory_space<vmem>>, %arg4: memref<8x128xf32, #tpu.memory_space<vmem>>) attributes {dimension_semantics = [#tpu.dimension_semantics<parallel>], iteration_bounds = array<i64: 1>, scalar_prefetch = 0 : i64, scratch_operands = 0 : i64, tpu.core_type = #tpu.core_type<tc>, window_params = [{transform_indices = @transform_0, window_bounds = array<i64: 8, 32>}, {transform_indices = @transform_1, window_bounds = array<i64: 8, 32>}, {transform_indices = @transform_2, window_bounds = array<i64: 8, 1>}, {transform_indices = @transform_3, window_bounds = array<i64: 8, 128>}]} {
    %c0 = arith.constant 0 : index
    %c0_0 = arith.constant 0 : index
    %0 = vector.load %arg1[%c0, %c0_0] : memref<8x32xf32, #tpu.memory_space<vmem>>, vector<8x32xf32>
    %c0_1 = arith.constant 0 : index
    %c0_2 = arith.constant 0 : index
    %1 = vector.load %arg2[%c0_1, %c0_2] : memref<8x32xf32, #tpu.memory_space<vmem>>, vector<8x32xf32>
    %2 = arith.subf %0, %1 : vector<8x32xf32>
    %c0_3 = arith.constant 0 : index
    %c0_4 = arith.constant 0 : index
    %3 = vector.load %arg3[%c0_3, %c0_4] : memref<8x1xf32, #tpu.memory_space<vmem>>, vector<8x1xf32>
    %4 = arith.mulf %2, %2 : vector<8x32xf32>
    %cst = arith.constant dense<0.000000e+00> : vector<8xf32>
    %5 = vector.multi_reduction <add>, %4, %cst [1] : vector<8x32xf32> to vector<8xf32>
    %6 = vector.shape_cast %5 : vector<8xf32> to vector<8x1xf32>
    %7 = math.sqrt %6 : vector<8x1xf32>
    %cst_5 = arith.constant 1.000000e+00 : f32
    %8 = vector.broadcast %cst_5 : f32 to vector<8x1xf32>
    %9 = arith.subf %8, %7 : vector<8x1xf32>
    %cst_6 = arith.constant 0.000000e+00 : f32
    %10 = vector.broadcast %cst_6 : f32 to vector<8x1xf32>
    %11 = arith.maximumf %9, %10 : vector<8x1xf32>
    %12 = arith.mulf %3, %6 : vector<8x1xf32>
    %cst_7 = arith.constant 1.000000e+00 : f32
    %13 = vector.broadcast %cst_7 : f32 to vector<8x1xf32>
    %14 = arith.subf %13, %3 : vector<8x1xf32>
    %15 = arith.mulf %11, %11 : vector<8x1xf32>
    %16 = arith.mulf %14, %15 : vector<8x1xf32>
    %17 = arith.addf %12, %16 : vector<8x1xf32>
    %18 = vector.shape_cast %17 : vector<8x1xf32> to vector<1x8x1xf32>
    %cst_8 = arith.constant dense<0.000000e+00> : vector<1xf32>
    %19 = vector.multi_reduction <add>, %18, %cst_8 [1, 2] : vector<1x8x1xf32> to vector<1xf32>
    %20 = vector.shape_cast %19 : vector<1xf32> to vector<1x1x1xf32>
    %21 = vector.extract %20[0, 0, 0] : f32 from vector<1x1x1xf32>
    %22 = vector.broadcast %21 : f32 to vector<8x128xf32>
    %c0_9 = arith.constant 0 : index
    %c0_10 = arith.constant 0 : index
    %23 = vector.load %arg4[%c0_9, %c0_10] : memref<8x128xf32, #tpu.memory_space<vmem>>, vector<8x128xf32>
    tpu.vector_store %arg4[%c0_9, %c0_10], %22 {strides = array<i32>} : memref<8x128xf32, #tpu.memory_space<vmem>>, vector<8x128xf32>,
    return
  }
  func.func @transform_0(%arg0: i32) -> (i32, i32) {
    %c0_i32 = arith.constant 0 : i32
    %c0_i32_0 = arith.constant 0 : i32
    return %arg0, %c0_i32 : i32, i32
  }
  func.func @transform_1(%arg0: i32) -> (i32, i32) {
    %c0_i32 = arith.constant 0 : i32
    %c0_i32_0 = arith.constant 0 : i32
    return %arg0, %c0_i32 : i32, i32
  }
  func.func @transform_2(%arg0: i32) -> (i32, i32) {
    %c0_i32 = arith.constant 0 : i32
    %c0_i32_0 = arith.constant 0 : i32
    return %arg0, %c0_i32 : i32, i32
  }
  func.func @transform_3(%arg0: i32) -> (i32, i32) {
    %c0_i32 = arith.constant 0 : i32
    %c0_i32_0 = arith.constant 0 : i32
    return %arg0, %c0_i32 : i32, i32
  }
}

</mosaic_0001>

<llo_original>
// kernel: tpu_custom_call.1
$region0: #{tpu_custom_call.1}
  #allocation0 [shape = 'u32[]', space=smem, size = 0x4, offset = 0x4, fixed_abs, tag = 'smem constant byte address 0x4 - core index']
  #allocation1 [shape = 'u32[144,128]{1,0:T(1,128)}', space=vmem, size = 0x12000, scoped, tag = 'internal scratch']
  %s0 = inlined_call_operand.vmem [shape: f32[8,32], index: 0, kind: input, shape index: {}]
  %s1 = inlined_call_operand.hbm [shape: f32[8,32], index: 1, kind: input, shape index: {}]
  %s2 = inlined_call_operand.vmem [shape: f32[8,1], index: 2, kind: input, shape index: {}]
  %s3 = inlined_call_operand.hbm [shape: f32[8,128], index: 3, kind: output, shape index: {}]
  %s4 = sld [smem:[#allocation0]]
  $region26: #{tpu_custom_call.1} parent=0
    _
  %s6 = ssub.s32 1, %s4
  %s7 = scalar_select 0, %s6, %s4
  $region1: #{tpu_custom_call.1} parent=0
    #allocation2 [shape = 'u8[4096]{0}', space=vmem, size = 0x1000, scoped, tag = 'input window, operand 1, single buffered']
    #allocation3 [shape = 's32[1]{0}', space=sflag, size = 0x4, scoped, tag = 'scoped memory for tpu_custom_call.1']
    #allocation4 [shape = 's32[1]{0}', space=sflag, size = 0x4, scoped, tag = 'scoped memory for tpu_custom_call.1']
    #allocation5 [shape = 'u8[4096]{0}', space=vmem, size = 0x1000, scoped, tag = 'output window, operand 0, single buffered']
    %8 = vsyncpa [#allocation3], 0
    %9 = vsyncpa [#allocation4], 0
    // Predicated region
    $region2: #{tpu_custom_call.1} parent=1 // pred_check
      _
    $region3: #{tpu_custom_call.1} parent=1 // pred_check_branch
      %11 = sbr.rel (0) target = $region5
    $region4: #{tpu_custom_call.1} parent=1 // pred_region
      _
    $region5: #{tpu_custom_call.1} parent=1 // pred_fallthru
      _
    // Predicated region
    $region6: #{tpu_custom_call.1} parent=1 // pred_check
      _
    $region7: #{tpu_custom_call.1} parent=1 // pred_check_branch
      %13 = sbr.rel (0) target = $region9
    $region8: #{tpu_custom_call.1} parent=1 // pred_region
      %s15 = ssub.s32 128, 128
      %16 = vsyncadd [#allocation3], %s15
      %s18 = sshll.u32 [#allocation2], 4
      %s19 = int_to_ptr.vmem [resolvable:$true] %s18
      %21 = dma.hbm_to_vmem [thread:$0]  %s1, 128, %s19, [#allocation3]
    $region9: #{tpu_custom_call.1} parent=1 // pred_fallthru
      _
    // Predicated region
    $region10: #{tpu_custom_call.1} parent=1 // pred_check
      _
    $region11: #{tpu_custom_call.1} parent=1 // pred_check_branch
      %23 = sbr.rel (0) target = $region13
    $region12: #{tpu_custom_call.1} parent=1 // pred_region
      _
    $region13: #{tpu_custom_call.1} parent=1 // pred_fallthru
      _
    // Predicated region
    $region14: #{tpu_custom_call.1} parent=1 // pred_check
      _
    $region15: #{tpu_custom_call.1} parent=1 // pred_check_branch
      %25 = sbr.rel (0) target = $region17
    $region16: #{tpu_custom_call.1} parent=1 // pred_region
      %26 = dma.done [#allocation3], 128
    $region17: #{tpu_custom_call.1} parent=1 // pred_fallthru
      _
    %v27 = vld [vmem:[%s0] sm:$0xff]
    %v28 = vld [vmem:[#allocation2] sm:$0xff]
    %v29 = vsub.f32 %v27, %v28
    %v30 = vld [vmem:[%s2] sm:$0xff]
    %v31 = vmul.f32 %v29, %v29
    %vm32 = vcmask 261120
    %v33 = vsel %vm32, %v31, 0.0
    %34 = vadd.xlane.f32.xlu0 %v33
    %v35 = vpop.xlane.xlu0 %34
    %v36 = vrsqrt.pop %v35
    %v37 = vmul.f32 %v35, %v36
    %vm38 = vcmp.eq.f32.partialorder %v35, inf
    %v39 = vsel %vm38, %v35, %v37
    %vm40 = vcmp.eq.f32.partialorder %v35, 0.0
    %v41 = vand.u32 %v35, 2147483648
    %v42 = vsel %vm40, %v41, %v39
    %v43 = vsub.f32 1.0, %v42
    %v44 = vmax.f32 %v43, 0.0
    %v45 = vmul.f32 %v30, %v35
    %v46 = vsub.f32 1.0, %v30
    %v47 = vmul.f32 %v44, %v44
    %v48 = vmul.f32 %v46, %v47
    %v49 = vadd.f32 %v45, %v48
    %vm50 = vcmask 7168
    %v51 = vsel %vm50, %v49, 0.0
    %52 = vadd.xlane.f32.xlu0 %v51
    %v53 = vpop.xlane.xlu0 %52
    %v54 = vrot.slane %v53, 4
    %v55 = vadd.f32 %v53, %v54
    %v56 = vrot.slane %v55, 2
    %v57 = vadd.f32 %v55, %v56
    %v58 = vrot.slane %v57, 1
    %v59 = vadd.f32 %v57, %v58
    %s60 = vtos %v59
    %v61 = vstv %s60
    %62 = vst [vmem:[#allocation5] sm:$0xff] %v61
    // Predicated region
    $region18: #{tpu_custom_call.1} parent=1 // pred_check
      _
    $region19: #{tpu_custom_call.1} parent=1 // pred_check_branch
      %64 = sbr.rel (0) target = $region21
    $region20: #{tpu_custom_call.1} parent=1 // pred_region
      %s66 = ssub.s32 128, 128
      %67 = vsyncadd [#allocation4], %s66
      %s69 = sshll.u32 [#allocation5], 4
      %s70 = int_to_ptr.vmem [resolvable:$true] %s69
      %72 = dma.vmem_to_hbm [thread:$0]  %s70, 128, %s3, [#allocation4]
    $region21: #{tpu_custom_call.1} parent=1 // pred_fallthru
      _
    // Predicated region
    $region22: #{tpu_custom_call.1} parent=1 // pred_check
      _
    $region23: #{tpu_custom_call.1} parent=1 // pred_check_branch
      %74 = sbr.rel (0) target = $region25
    $region24: #{tpu_custom_call.1} parent=1 // pred_region
      %75 = dma.done [#allocation4], 128
    $region25: #{tpu_custom_call.1} parent=1 // pred_fallthru
      _
    %76 = vsyncpa [#allocation3], 1
    %77 = vsyncpa [#allocation4], 1

</llo_original>
